<compile_context>
chip_gen: v7x
topology: tpu7x:2x2x1
jax: 0.10.0
libtpu: 0.0.40
codegen_flags: <defaults>
</compile_context>

<pallas_src>
import jax
import jax.numpy as jnp
import numpy as np
from jax.experimental import pallas as pl
from jax.experimental.pallas import tpu as pltpu

# small, module-consistent shapes
B, T, E, H, V = 2, 8, 32, 32, 50          # batch, sequence_len, embed_size, lstm_dim, n_terms
H2, H4, H8 = 2 * H, 4 * H, 8 * H


def text_lstm_kernel(embp_ref, wih_ref, bias_ref, whh_ref, wpair_ref, bpair_ref, out_ref):
    # Hoisted input projection: one (T*B, 2E) @ (2E, 8H) MXU matmul covers both
    # directions and every timestep (cols 0:E of embp are emb[t], cols E:2E are
    # emb[T-1-t], and wih is block-structured so each half feeds its direction).
    x_proj = (jnp.dot(embp_ref[...], wih_ref[...], preferred_element_type=jnp.float32)
              + bias_ref[...])                                   # (T*B, 8H)
    w_hh = whh_ref[...]                                          # (2H, 8H) block-diagonal

    h = jnp.zeros((B, H2), jnp.float32)                          # [h_f | h_b]
    c = jnp.zeros((B, H2), jnp.float32)                          # [c_f | c_b]
    mx = None                                                    # running temporal max

    # T is small & static: fully unrolled so fwd/bwd chains interleave in the VLIW schedule.
    for t in range(T):
        gx = x_proj[t * B:(t + 1) * B, :]                        # static slice, (B, 8H)
        gates = gx + jnp.dot(h, w_hh, preferred_element_type=jnp.float32)   # (B, 8H)
        # gate column layout (after wrapper-side permutation):
        #   [i_f i_b | f_f f_b | g_f g_b | o_f o_b], each block H wide.
        # The g block's pre-activation is pre-scaled by 2 in the wrapper, so a single
        # sigmoid pass yields all gates:  tanh(z) = 2*sigmoid(2z) - 1.
        sg = jax.nn.sigmoid(gates)                               # ONE EUP pass, full width
        i_g = sg[:, 0:H2]
        f_g = sg[:, H2:2 * H2]
        g_g = sg[:, 2 * H2:3 * H2] * 2.0 - 1.0                   # == tanh(orig g preact), VPU
        o_g = sg[:, 3 * H2:4 * H2]
        c = f_g * c + i_g * g_g
        h = o_g * jnp.tanh(c)
        mx = h if mx is None else jnp.maximum(mx, h)             # == MaxPool1d(T)

    # Fused head: (B, 2H) @ (2H, 2) + (1, 2)  ->  [-logit, logit] directly.
    out_ref[...] = (jnp.dot(mx, wpair_ref[...], preferred_element_type=jnp.float32)
                    + bpair_ref[...])                            # (B, 2)


def _build_fused_weights(params):
    """Fold both directions into single matrices with gate columns permuted to
    [i_f i_b | f_f f_b | g_f g_b | o_f o_b] so the kernel slices contiguous blocks.
    The g-gate columns are additionally scaled by 2 (tanh-via-sigmoid fold)."""
    # Non-interleaved layout first: cols = [i_f f_f g_f o_f | i_b f_b g_b o_b].
    z_e = jnp.zeros((E, H4), jnp.float32)
    z_h = jnp.zeros((H, H4), jnp.float32)
    w_ih = jnp.concatenate([
        jnp.concatenate([params["w_ih_f"].T, z_e], axis=1),      # rows 0:E  -> fwd emb
        jnp.concatenate([z_e, params["w_ih_b"].T], axis=1),      # rows E:2E -> bwd emb
    ], axis=0)                                                    # (2E, 8H)
    w_hh = jnp.concatenate([
        jnp.concatenate([params["w_hh_f"].T, z_h], axis=1),      # rows 0:H  -> h_f
        jnp.concatenate([z_h, params["w_hh_b"].T], axis=1),      # rows H:2H -> h_b
    ], axis=0)                                                    # (2H, 8H)
    bias = jnp.concatenate([params["b_ih_f"] + params["b_hh_f"],
                            params["b_ih_b"] + params["b_hh_b"]])  # (8H,)
    # column permutation (H-blocks): [i_f,f_f,g_f,o_f,i_b,f_b,g_b,o_b] -> interleaved
    perm = np.concatenate([np.arange(H) + blk * H for blk in (0, 4, 1, 5, 2, 6, 3, 7)])
    w_ih = w_ih[:, perm]
    w_hh = w_hh[:, perm]
    bias = bias[perm].reshape(1, H8)
    # tanh fold: scale the fused g block (cols 2*H2:3*H2) by 2 so the kernel can use
    # tanh(z) = 2*sigmoid(2z) - 1 with one sigmoid pass over all gates.
    g_scale = jnp.ones((H8,), jnp.float32).at[2 * H2:3 * H2].set(2.0)
    return w_ih * g_scale, w_hh * g_scale, bias * g_scale


def text_lstm_forward(x_tokens, params):
    # --- glue: embedding gather + layout ---
    emb = params["embed"][x_tokens].astype(jnp.float32)          # (B, T, E)
    emb_tm = jnp.transpose(emb, (1, 0, 2))                       # (T, B, E) time-major
    # pack forward timestep t next to backward timestep T-1-t so one hoisted matmul
    # covers both directions' input projections at matching loop steps
    emb_pair = jnp.concatenate([emb_tm, emb_tm[::-1]], axis=-1)  # (T, B, 2E)
    emb_pair = emb_pair.reshape(T * B, 2 * E)

    w_ih, w_hh, bias = _build_fused_weights(params)
    w_lin_t = params["w_lin"].T.astype(jnp.float32)              # (2H, 1)
    w_pair = jnp.concatenate([-w_lin_t, w_lin_t], axis=1)        # (2H, 2) -> [-logit, logit]
    b_lin = params["b_lin"].astype(jnp.float32)                  # (1,)
    b_pair = jnp.concatenate([-b_lin, b_lin]).reshape(1, 2)      # (1, 2)

    vmem = pl.BlockSpec(memory_space=pltpu.MemorySpace.VMEM)
    return pl.pallas_call(
        text_lstm_kernel,
        out_shape=jax.ShapeDtypeStruct((B, 2), jnp.float32),
        in_specs=[vmem] * 6,
        out_specs=vmem,
    )(emb_pair, w_ih, bias, w_hh, w_pair, b_pair)


def reference_forward(x_tokens, params):
    """Pure-JAX reference (eval-mode semantics of the PyTorch module)."""
    hi = jax.lax.Precision.HIGHEST
    emb = params["embed"][x_tokens]                              # (B, T, E)

    def run_dir(w_ih, w_hh, b_ih, b_hh, reverse):
        h = jnp.zeros((B, H), jnp.float32)
        c = jnp.zeros((B, H), jnp.float32)
        hs = []
        ts = range(T - 1, -1, -1) if reverse else range(T)
        for t in ts:
            g = (jnp.dot(emb[:, t, :], w_ih.T, precision=hi)
                 + jnp.dot(h, w_hh.T, precision=hi) + b_ih + b_hh)
            i_g = jax.nn.sigmoid(g[:, :H])
            f_g = jax.nn.sigmoid(g[:, H:2 * H])
            g_g = jnp.tanh(g[:, 2 * H:3 * H])
            o_g = jax.nn.sigmoid(g[:, 3 * H:])
            c = f_g * c + i_g * g_g
            h = o_g * jnp.tanh(c)
            hs.append(h)
        return jnp.max(jnp.stack(hs, axis=0), axis=0)            # temporal max == MaxPool1d(T)

    mx_f = run_dir(params["w_ih_f"], params["w_hh_f"], params["b_ih_f"], params["b_hh_f"], False)
    mx_b = run_dir(params["w_ih_b"], params["w_hh_b"], params["b_ih_b"], params["b_hh_b"], True)
    pooled = jnp.concatenate([mx_f, mx_b], axis=-1)
    logit = jnp.dot(pooled, params["w_lin"].T, precision=hi) + params["b_lin"]
    return jnp.concatenate([-logit, logit], axis=1)


def init_params(key):
    ks = jax.random.split(key, 12)
    k_lstm = 1.0 / np.sqrt(H)
    k_lin = 1.0 / np.sqrt(2 * H)
    u = lambda k, shape, s: jax.random.uniform(k, shape, jnp.float32, -s, s)
    return {
        "embed": jax.random.normal(ks[0], (V, E), jnp.float32),
        "w_ih_f": u(ks[1], (4 * H, E), k_lstm),
        "w_hh_f": u(ks[2], (4 * H, H), k_lstm),
        "b_ih_f": u(ks[3], (4 * H,), k_lstm),
        "b_hh_f": u(ks[4], (4 * H,), k_lstm),
        "w_ih_b": u(ks[5], (4 * H, E), k_lstm),
        "w_hh_b": u(ks[6], (4 * H, H), k_lstm),
        "b_ih_b": u(ks[7], (4 * H,), k_lstm),
        "b_hh_b": u(ks[8], (4 * H,), k_lstm),
        "w_lin": u(ks[9], (1, 2 * H), k_lin),
        "b_lin": u(ks[10], (1,), k_lin),
    }


if __name__ == "__main__":
    key = jax.random.PRNGKey(0)
    pkey, xkey = jax.random.split(key)
    params = init_params(pkey)
    x = jax.random.randint(xkey, (B, T), 0, V, dtype=jnp.int32)   # token ids

    out = jax.block_until_ready(text_lstm_forward(x, params))
    ref = jax.block_until_ready(reference_forward(x, params))

    assert out.shape == (B, 2) and out.dtype == jnp.float32
    np.testing.assert_allclose(np.asarray(out), np.asarray(ref), rtol=2e-3, atol=2e-3)
    print("KERNEL_OK")
</pallas_src>

<mosaic_0001>
module attributes {stable_mosaic.version = 11 : i64} {
  func.func @text_lstm_kernel(%arg0: memref<16x64xf32, #tpu.memory_space<vmem>>, %arg1: memref<64x256xf32, #tpu.memory_space<vmem>>, %arg2: memref<1x256xf32, #tpu.memory_space<vmem>>, %arg3: memref<64x256xf32, #tpu.memory_space<vmem>>, %arg4: memref<64x2xf32, #tpu.memory_space<vmem>>, %arg5: memref<1x2xf32, #tpu.memory_space<vmem>>, %arg6: memref<2x2xf32, #tpu.memory_space<vmem>>) attributes {dimension_semantics = [], scalar_prefetch = 0 : i64, scratch_operands = 0 : i64, tpu.core_type = #tpu.core_type<tc>} {
    %c0 = arith.constant 0 : index
    %c0_0 = arith.constant 0 : index
    %0 = vector.load %arg0[%c0, %c0_0] : memref<16x64xf32, #tpu.memory_space<vmem>>, vector<16x64xf32>
    %c0_1 = arith.constant 0 : index
    %c0_2 = arith.constant 0 : index
    %1 = vector.load %arg1[%c0_1, %c0_2] : memref<64x256xf32, #tpu.memory_space<vmem>>, vector<64x256xf32>
    %cst = arith.constant dense<0.000000e+00> : vector<16x256xf32>
    %2 = tpu.matmul %0, %1, %cst {dimension_numbers = #tpu.dot_dimension_numbers<[1], [0], [0], [1], [0, 0, 1, 1], [], []>} : vector<16x64xf32>, vector<64x256xf32>, vector<16x256xf32> -> vector<16x256xf32>
    %c0_3 = arith.constant 0 : index
    %c0_4 = arith.constant 0 : index
    %3 = vector.load %arg2[%c0_3, %c0_4] : memref<1x256xf32, #tpu.memory_space<vmem>>, vector<1x256xf32>
    %4 = vector.broadcast %3 : vector<1x256xf32> to vector<16x256xf32>
    %5 = arith.addf %2, %4 : vector<16x256xf32>
    %c0_5 = arith.constant 0 : index
    %c0_6 = arith.constant 0 : index
    %6 = vector.load %arg3[%c0_5, %c0_6] : memref<64x256xf32, #tpu.memory_space<vmem>>, vector<64x256xf32>
    %cst_7 = arith.constant 0.000000e+00 : f32
    %7 = vector.broadcast %cst_7 : f32 to vector<2x64xf32>
    %cst_8 = arith.constant 0.000000e+00 : f32
    %8 = vector.broadcast %cst_8 : f32 to vector<2x64xf32>
    %9 = vector.extract_strided_slice %5 {offsets = [0, 0], sizes = [2, 256], strides = [1, 1]} : vector<16x256xf32> to vector<2x256xf32>
    %cst_9 = arith.constant dense<0.000000e+00> : vector<2x256xf32>
    %10 = tpu.matmul %7, %6, %cst_9 {dimension_numbers = #tpu.dot_dimension_numbers<[1], [0], [0], [1], [0, 0, 1, 1], [], []>} : vector<2x64xf32>, vector<64x256xf32>, vector<2x256xf32> -> vector<2x256xf32>
    %11 = arith.addf %9, %10 : vector<2x256xf32>
    %12 = arith.negf %11 : vector<2x256xf32>
    %13 = math.exp %12 : vector<2x256xf32>
    %cst_10 = arith.constant 1.000000e+00 : f32
    %14 = vector.broadcast %cst_10 : f32 to vector<2x256xf32>
    %15 = arith.addf %14, %13 : vector<2x256xf32>
    %16 = arith.divf %14, %15 : vector<2x256xf32>
    %17 = vector.extract_strided_slice %16 {offsets = [0, 0], sizes = [2, 64], strides = [1, 1]} : vector<2x256xf32> to vector<2x64xf32>
    %18 = vector.extract_strided_slice %16 {offsets = [0, 64], sizes = [2, 64], strides = [1, 1]} : vector<2x256xf32> to vector<2x64xf32>
    %19 = vector.extract_strided_slice %16 {offsets = [0, 128], sizes = [2, 64], strides = [1, 1]} : vector<2x256xf32> to vector<2x64xf32>
    %cst_11 = arith.constant 2.000000e+00 : f32
    %20 = vector.broadcast %cst_11 : f32 to vector<2x64xf32>
    %21 = arith.mulf %19, %20 : vector<2x64xf32>
    %cst_12 = arith.constant 1.000000e+00 : f32
    %22 = vector.broadcast %cst_12 : f32 to vector<2x64xf32>
    %23 = arith.subf %21, %22 : vector<2x64xf32>
    %24 = vector.extract_strided_slice %16 {offsets = [0, 192], sizes = [2, 64], strides = [1, 1]} : vector<2x256xf32> to vector<2x64xf32>
    %25 = arith.mulf %18, %8 : vector<2x64xf32>
    %26 = arith.mulf %17, %23 : vector<2x64xf32>
    %27 = arith.addf %25, %26 : vector<2x64xf32>
    %28 = math.tanh %27 : vector<2x64xf32>
    %29 = arith.mulf %24, %28 : vector<2x64xf32>
    %30 = vector.extract_strided_slice %5 {offsets = [2, 0], sizes = [2, 256], strides = [1, 1]} : vector<16x256xf32> to vector<2x256xf32>
    %cst_13 = arith.constant dense<0.000000e+00> : vector<2x256xf32>
    %31 = tpu.matmul %29, %6, %cst_13 {dimension_numbers = #tpu.dot_dimension_numbers<[1], [0], [0], [1], [0, 0, 1, 1], [], []>} : vector<2x64xf32>, vector<64x256xf32>, vector<2x256xf32> -> vector<2x256xf32>
    %32 = arith.addf %30, %31 : vector<2x256xf32>
    %33 = arith.negf %32 : vector<2x256xf32>
    %34 = math.exp %33 : vector<2x256xf32>
    %cst_14 = arith.constant 1.000000e+00 : f32
    %35 = vector.broadcast %cst_14 : f32 to vector<2x256xf32>
    %36 = arith.addf %35, %34 : vector<2x256xf32>
    %37 = arith.divf %35, %36 : vector<2x256xf32>
    %38 = vector.extract_strided_slice %37 {offsets = [0, 0], sizes = [2, 64], strides = [1, 1]} : vector<2x256xf32> to vector<2x64xf32>
    %39 = vector.extract_strided_slice %37 {offsets = [0, 64], sizes = [2, 64], strides = [1, 1]} : vector<2x256xf32> to vector<2x64xf32>
    %40 = vector.extract_strided_slice %37 {offsets = [0, 128], sizes = [2, 64], strides = [1, 1]} : vector<2x256xf32> to vector<2x64xf32>
    %cst_15 = arith.constant 2.000000e+00 : f32
    %41 = vector.broadcast %cst_15 : f32 to vector<2x64xf32>
    %42 = arith.mulf %40, %41 : vector<2x64xf32>
    %cst_16 = arith.constant 1.000000e+00 : f32
    %43 = vector.broadcast %cst_16 : f32 to vector<2x64xf32>
    %44 = arith.subf %42, %43 : vector<2x64xf32>
    %45 = vector.extract_strided_slice %37 {offsets = [0, 192], sizes = [2, 64], strides = [1, 1]} : vector<2x256xf32> to vector<2x64xf32>
    %46 = arith.mulf %39, %27 : vector<2x64xf32>
    %47 = arith.mulf %38, %44 : vector<2x64xf32>
    %48 = arith.addf %46, %47 : vector<2x64xf32>
    %49 = math.tanh %48 : vector<2x64xf32>
    %50 = arith.mulf %45, %49 : vector<2x64xf32>
    %51 = arith.maximumf %29, %50 : vector<2x64xf32>
    %52 = vector.extract_strided_slice %5 {offsets = [4, 0], sizes = [2, 256], strides = [1, 1]} : vector<16x256xf32> to vector<2x256xf32>
    %cst_17 = arith.constant dense<0.000000e+00> : vector<2x256xf32>
    %53 = tpu.matmul %50, %6, %cst_17 {dimension_numbers = #tpu.dot_dimension_numbers<[1], [0], [0], [1], [0, 0, 1, 1], [], []>} : vector<2x64xf32>, vector<64x256xf32>, vector<2x256xf32> -> vector<2x256xf32>
    %54 = arith.addf %52, %53 : vector<2x256xf32>
    %55 = arith.negf %54 : vector<2x256xf32>
    %56 = math.exp %55 : vector<2x256xf32>
    %cst_18 = arith.constant 1.000000e+00 : f32
    %57 = vector.broadcast %cst_18 : f32 to vector<2x256xf32>
    %58 = arith.addf %57, %56 : vector<2x256xf32>
    %59 = arith.divf %57, %58 : vector<2x256xf32>
    %60 = vector.extract_strided_slice %59 {offsets = [0, 0], sizes = [2, 64], strides = [1, 1]} : vector<2x256xf32> to vector<2x64xf32>
    %61 = vector.extract_strided_slice %59 {offsets = [0, 64], sizes = [2, 64], strides = [1, 1]} : vector<2x256xf32> to vector<2x64xf32>
    %62 = vector.extract_strided_slice %59 {offsets = [0, 128], sizes = [2, 64], strides = [1, 1]} : vector<2x256xf32> to vector<2x64xf32>
    %cst_19 = arith.constant 2.000000e+00 : f32
    %63 = vector.broadcast %cst_19 : f32 to vector<2x64xf32>
    %64 = arith.mulf %62, %63 : vector<2x64xf32>
    %cst_20 = arith.constant 1.000000e+00 : f32
    %65 = vector.broadcast %cst_20 : f32 to vector<2x64xf32>
    %66 = arith.subf %64, %65 : vector<2x64xf32>
    %67 = vector.extract_strided_slice %59 {offsets = [0, 192], sizes = [2, 64], strides = [1, 1]} : vector<2x256xf32> to vector<2x64xf32>
    %68 = arith.mulf %61, %48 : vector<2x64xf32>
    %69 = arith.mulf %60, %66 : vector<2x64xf32>
    %70 = arith.addf %68, %69 : vector<2x64xf32>
    %71 = math.tanh %70 : vector<2x64xf32>
    %72 = arith.mulf %67, %71 : vector<2x64xf32>
    %73 = arith.maximumf %51, %72 : vector<2x64xf32>
    %74 = vector.extract_strided_slice %5 {offsets = [6, 0], sizes = [2, 256], strides = [1, 1]} : vector<16x256xf32> to vector<2x256xf32>
    %cst_21 = arith.constant dense<0.000000e+00> : vector<2x256xf32>
    %75 = tpu.matmul %72, %6, %cst_21 {dimension_numbers = #tpu.dot_dimension_numbers<[1], [0], [0], [1], [0, 0, 1, 1], [], []>} : vector<2x64xf32>, vector<64x256xf32>, vector<2x256xf32> -> vector<2x256xf32>
    %76 = arith.addf %74, %75 : vector<2x256xf32>
    %77 = arith.negf %76 : vector<2x256xf32>
    %78 = math.exp %77 : vector<2x256xf32>
    %cst_22 = arith.constant 1.000000e+00 : f32
    %79 = vector.broadcast %cst_22 : f32 to vector<2x256xf32>
    %80 = arith.addf %79, %78 : vector<2x256xf32>
    %81 = arith.divf %79, %80 : vector<2x256xf32>
    %82 = vector.extract_strided_slice %81 {offsets = [0, 0], sizes = [2, 64], strides = [1, 1]} : vector<2x256xf32> to vector<2x64xf32>
    %83 = vector.extract_strided_slice %81 {offsets = [0, 64], sizes = [2, 64], strides = [1, 1]} : vector<2x256xf32> to vector<2x64xf32>
    %84 = vector.extract_strided_slice %81 {offsets = [0, 128], sizes = [2, 64], strides = [1, 1]} : vector<2x256xf32> to vector<2x64xf32>
    %cst_23 = arith.constant 2.000000e+00 : f32
    %85 = vector.broadcast %cst_23 : f32 to vector<2x64xf32>
    %86 = arith.mulf %84, %85 : vector<2x64xf32>
    %cst_24 = arith.constant 1.000000e+00 : f32
    %87 = vector.broadcast %cst_24 : f32 to vector<2x64xf32>
    %88 = arith.subf %86, %87 : vector<2x64xf32>
    %89 = vector.extract_strided_slice %81 {offsets = [0, 192], sizes = [2, 64], strides = [1, 1]} : vector<2x256xf32> to vector<2x64xf32>
    %90 = arith.mulf %83, %70 : vector<2x64xf32>
    %91 = arith.mulf %82, %88 : vector<2x64xf32>
    %92 = arith.addf %90, %91 : vector<2x64xf32>
    %93 = math.tanh %92 : vector<2x64xf32>
    %94 = arith.mulf %89, %93 : vector<2x64xf32>
    %95 = arith.maximumf %73, %94 : vector<2x64xf32>
    %96 = vector.extract_strided_slice %5 {offsets = [8, 0], sizes = [2, 256], strides = [1, 1]} : vector<16x256xf32> to vector<2x256xf32>
    %cst_25 = arith.constant dense<0.000000e+00> : vector<2x256xf32>
    %97 = tpu.matmul %94, %6, %cst_25 {dimension_numbers = #tpu.dot_dimension_numbers<[1], [0], [0], [1], [0, 0, 1, 1], [], []>} : vector<2x64xf32>, vector<64x256xf32>, vector<2x256xf32> -> vector<2x256xf32>
    %98 = arith.addf %96, %97 : vector<2x256xf32>
    %99 = arith.negf %98 : vector<2x256xf32>
    %100 = math.exp %99 : vector<2x256xf32>
    %cst_26 = arith.constant 1.000000e+00 : f32
    %101 = vector.broadcast %cst_26 : f32 to vector<2x256xf32>
    %102 = arith.addf %101, %100 : vector<2x256xf32>
    %103 = arith.divf %101, %102 : vector<2x256xf32>
    %104 = vector.extract_strided_slice %103 {offsets = [0, 0], sizes = [2, 64], strides = [1, 1]} : vector<2x256xf32> to vector<2x64xf32>
    %105 = vector.extract_strided_slice %103 {offsets = [0, 64], sizes = [2, 64], strides = [1, 1]} : vector<2x256xf32> to vector<2x64xf32>
    %106 = vector.extract_strided_slice %103 {offsets = [0, 128], sizes = [2, 64], strides = [1, 1]} : vector<2x256xf32> to vector<2x64xf32>
    %cst_27 = arith.constant 2.000000e+00 : f32
    %107 = vector.broadcast %cst_27 : f32 to vector<2x64xf32>
    %108 = arith.mulf %106, %107 : vector<2x64xf32>
    %cst_28 = arith.constant 1.000000e+00 : f32
    %109 = vector.broadcast %cst_28 : f32 to vector<2x64xf32>
    %110 = arith.subf %108, %109 : vector<2x64xf32>
    %111 = vector.extract_strided_slice %103 {offsets = [0, 192], sizes = [2, 64], strides = [1, 1]} : vector<2x256xf32> to vector<2x64xf32>
    %112 = arith.mulf %105, %92 : vector<2x64xf32>
    %113 = arith.mulf %104, %110 : vector<2x64xf32>
    %114 = arith.addf %112, %113 : vector<2x64xf32>
    %115 = math.tanh %114 : vector<2x64xf32>
    %116 = arith.mulf %111, %115 : vector<2x64xf32>
    %117 = arith.maximumf %95, %116 : vector<2x64xf32>
    %118 = vector.extract_strided_slice %5 {offsets = [10, 0], sizes = [2, 256], strides = [1, 1]} : vector<16x256xf32> to vector<2x256xf32>
    %cst_29 = arith.constant dense<0.000000e+00> : vector<2x256xf32>
    %119 = tpu.matmul %116, %6, %cst_29 {dimension_numbers = #tpu.dot_dimension_numbers<[1], [0], [0], [1], [0, 0, 1, 1], [], []>} : vector<2x64xf32>, vector<64x256xf32>, vector<2x256xf32> -> vector<2x256xf32>
    %120 = arith.addf %118, %119 : vector<2x256xf32>
    %121 = arith.negf %120 : vector<2x256xf32>
    %122 = math.exp %121 : vector<2x256xf32>
    %cst_30 = arith.constant 1.000000e+00 : f32
    %123 = vector.broadcast %cst_30 : f32 to vector<2x256xf32>
    %124 = arith.addf %123, %122 : vector<2x256xf32>
    %125 = arith.divf %123, %124 : vector<2x256xf32>
    %126 = vector.extract_strided_slice %125 {offsets = [0, 0], sizes = [2, 64], strides = [1, 1]} : vector<2x256xf32> to vector<2x64xf32>
    %127 = vector.extract_strided_slice %125 {offsets = [0, 64], sizes = [2, 64], strides = [1, 1]} : vector<2x256xf32> to vector<2x64xf32>
    %128 = vector.extract_strided_slice %125 {offsets = [0, 128], sizes = [2, 64], strides = [1, 1]} : vector<2x256xf32> to vector<2x64xf32>
    %cst_31 = arith.constant 2.000000e+00 : f32
    %129 = vector.broadcast %cst_31 : f32 to vector<2x64xf32>
    %130 = arith.mulf %128, %129 : vector<2x64xf32>
    %cst_32 = arith.constant 1.000000e+00 : f32
    %131 = vector.broadcast %cst_32 : f32 to vector<2x64xf32>
    %132 = arith.subf %130, %131 : vector<2x64xf32>
    %133 = vector.extract_strided_slice %125 {offsets = [0, 192], sizes = [2, 64], strides = [1, 1]} : vector<2x256xf32> to vector<2x64xf32>
    %134 = arith.mulf %127, %114 : vector<2x64xf32>
    %135 = arith.mulf %126, %132 : vector<2x64xf32>
    %136 = arith.addf %134, %135 : vector<2x64xf32>
    %137 = math.tanh %136 : vector<2x64xf32>
    %138 = arith.mulf %133, %137 : vector<2x64xf32>
    %139 = arith.maximumf %117, %138 : vector<2x64xf32>
    %140 = vector.extract_strided_slice %5 {offsets = [12, 0], sizes = [2, 256], strides = [1, 1]} : vector<16x256xf32> to vector<2x256xf32>
    %cst_33 = arith.constant dense<0.000000e+00> : vector<2x256xf32>
    %141 = tpu.matmul %138, %6, %cst_33 {dimension_numbers = #tpu.dot_dimension_numbers<[1], [0], [0], [1], [0, 0, 1, 1], [], []>} : vector<2x64xf32>, vector<64x256xf32>, vector<2x256xf32> -> vector<2x256xf32>
    %142 = arith.addf %140, %141 : vector<2x256xf32>
    %143 = arith.negf %142 : vector<2x256xf32>
    %144 = math.exp %143 : vector<2x256xf32>
    %cst_34 = arith.constant 1.000000e+00 : f32
    %145 = vector.broadcast %cst_34 : f32 to vector<2x256xf32>
    %146 = arith.addf %145, %144 : vector<2x256xf32>
    %147 = arith.divf %145, %146 : vector<2x256xf32>
    %148 = vector.extract_strided_slice %147 {offsets = [0, 0], sizes = [2, 64], strides = [1, 1]} : vector<2x256xf32> to vector<2x64xf32>
    %149 = vector.extract_strided_slice %147 {offsets = [0, 64], sizes = [2, 64], strides = [1, 1]} : vector<2x256xf32> to vector<2x64xf32>
    %150 = vector.extract_strided_slice %147 {offsets = [0, 128], sizes = [2, 64], strides = [1, 1]} : vector<2x256xf32> to vector<2x64xf32>
    %cst_35 = arith.constant 2.000000e+00 : f32
    %151 = vector.broadcast %cst_35 : f32 to vector<2x64xf32>
    %152 = arith.mulf %150, %151 : vector<2x64xf32>
    %cst_36 = arith.constant 1.000000e+00 : f32
    %153 = vector.broadcast %cst_36 : f32 to vector<2x64xf32>
    %154 = arith.subf %152, %153 : vector<2x64xf32>
    %155 = vector.extract_strided_slice %147 {offsets = [0, 192], sizes = [2, 64], strides = [1, 1]} : vector<2x256xf32> to vector<2x64xf32>
    %156 = arith.mulf %149, %136 : vector<2x64xf32>
    %157 = arith.mulf %148, %154 : vector<2x64xf32>
    %158 = arith.addf %156, %157 : vector<2x64xf32>
    %159 = math.tanh %158 : vector<2x64xf32>
    %160 = arith.mulf %155, %159 : vector<2x64xf32>
    %161 = arith.maximumf %139, %160 : vector<2x64xf32>
    %162 = vector.extract_strided_slice %5 {offsets = [14, 0], sizes = [2, 256], strides = [1, 1]} : vector<16x256xf32> to vector<2x256xf32>
    %cst_37 = arith.constant dense<0.000000e+00> : vector<2x256xf32>
    %163 = tpu.matmul %160, %6, %cst_37 {dimension_numbers = #tpu.dot_dimension_numbers<[1], [0], [0], [1], [0, 0, 1, 1], [], []>} : vector<2x64xf32>, vector<64x256xf32>, vector<2x256xf32> -> vector<2x256xf32>
    %164 = arith.addf %162, %163 : vector<2x256xf32>
    %165 = arith.negf %164 : vector<2x256xf32>
    %166 = math.exp %165 : vector<2x256xf32>
    %cst_38 = arith.constant 1.000000e+00 : f32
    %167 = vector.broadcast %cst_38 : f32 to vector<2x256xf32>
    %168 = arith.addf %167, %166 : vector<2x256xf32>
    %169 = arith.divf %167, %168 : vector<2x256xf32>
    %170 = vector.extract_strided_slice %169 {offsets = [0, 0], sizes = [2, 64], strides = [1, 1]} : vector<2x256xf32> to vector<2x64xf32>
    %171 = vector.extract_strided_slice %169 {offsets = [0, 64], sizes = [2, 64], strides = [1, 1]} : vector<2x256xf32> to vector<2x64xf32>
    %172 = vector.extract_strided_slice %169 {offsets = [0, 128], sizes = [2, 64], strides = [1, 1]} : vector<2x256xf32> to vector<2x64xf32>
    %cst_39 = arith.constant 2.000000e+00 : f32
    %173 = vector.broadcast %cst_39 : f32 to vector<2x64xf32>
    %174 = arith.mulf %172, %173 : vector<2x64xf32>
    %cst_40 = arith.constant 1.000000e+00 : f32
    %175 = vector.broadcast %cst_40 : f32 to vector<2x64xf32>
    %176 = arith.subf %174, %175 : vector<2x64xf32>
    %177 = vector.extract_strided_slice %169 {offsets = [0, 192], sizes = [2, 64], strides = [1, 1]} : vector<2x256xf32> to vector<2x64xf32>
    %178 = arith.mulf %171, %158 : vector<2x64xf32>
    %179 = arith.mulf %170, %176 : vector<2x64xf32>
    %180 = arith.addf %178, %179 : vector<2x64xf32>
    %181 = math.tanh %180 : vector<2x64xf32>
    %182 = arith.mulf %177, %181 : vector<2x64xf32>
    %183 = arith.maximumf %161, %182 : vector<2x64xf32>
    %c0_41 = arith.constant 0 : index
    %c0_42 = arith.constant 0 : index
    %184 = vector.load %arg4[%c0_41, %c0_42] : memref<64x2xf32, #tpu.memory_space<vmem>>, vector<64x2xf32>
    %cst_43 = arith.constant dense<0.000000e+00> : vector<2x2xf32>
    %185 = tpu.matmul %183, %184, %cst_43 {dimension_numbers = #tpu.dot_dimension_numbers<[1], [0], [0], [1], [0, 0, 1, 1], [], []>} : vector<2x64xf32>, vector<64x2xf32>, vector<2x2xf32> -> vector<2x2xf32>
    %c0_44 = arith.constant 0 : index
    %c0_45 = arith.constant 0 : index
    %186 = vector.load %arg5[%c0_44, %c0_45] : memref<1x2xf32, #tpu.memory_space<vmem>>, vector<1x2xf32>
    %187 = vector.broadcast %186 : vector<1x2xf32> to vector<2x2xf32>
    %188 = arith.addf %185, %187 : vector<2x2xf32>
    %c0_46 = arith.constant 0 : index
    %c0_47 = arith.constant 0 : index
    %189 = vector.load %arg6[%c0_46, %c0_47] : memref<2x2xf32, #tpu.memory_space<vmem>>, vector<2x2xf32>
    tpu.vector_store %arg6[%c0_46, %c0_47], %188 {strides = array<i32>} : memref<2x2xf32, #tpu.memory_space<vmem>>, vector<2x2xf32>,
    return
  }
}

</mosaic_0001>

<llo_original>
// kernel: tpu_custom_call.1
$region0: #{tpu_custom_call.1}
  #allocation0 [shape = 'u32[]', space=smem, size = 0x4, offset = 0x4, fixed_abs, tag = 'smem constant byte address 0x4 - core index']
  #allocation1 [shape = 'u32[144,128]{1,0:T(1,128)}', space=vmem, size = 0x12000, scoped, tag = 'internal scratch']
  %s0 = inlined_call_operand.vmem [shape: f32[16,64], index: 0, kind: input, shape index: {}]
  %s1 = inlined_call_operand.hbm [shape: f32[64,256], index: 1, kind: input, shape index: {}]
  %s2 = inlined_call_operand.vmem [shape: f32[1,256], index: 2, kind: input, shape index: {}]
  %s3 = inlined_call_operand.hbm [shape: f32[64,256], index: 3, kind: input, shape index: {}]
  %s4 = inlined_call_operand.vmem [shape: f32[64,2], index: 4, kind: input, shape index: {}]
  %s5 = inlined_call_operand.vmem [shape: f32[1,2], index: 5, kind: input, shape index: {}]
  %s6 = inlined_call_operand.hbm [shape: f32[2,2], index: 6, kind: output, shape index: {}]
  %s7 = sld [smem:[#allocation0]]
  $region42: #{tpu_custom_call.1} parent=0
    _
  %s9 = ssub.s32 1, %s7
  %s10 = scalar_select 0, %s9, %s7
  $region1: #{tpu_custom_call.1} parent=0
    #allocation2 [shape = 'u8[65536]{0}', space=vmem, size = 0x10000, scoped, tag = 'input window, operand 1, single buffered']
    #allocation3 [shape = 's32[1]{0}', space=sflag, size = 0x4, scoped, tag = 'scoped memory for tpu_custom_call.1']
    #allocation4 [shape = 's32[1]{0}', space=sflag, size = 0x4, scoped, tag = 'scoped memory for tpu_custom_call.1']
    #allocation5 [shape = 'u8[65536]{0}', space=vmem, size = 0x10000, scoped, tag = 'input window, operand 3, single buffered']
    #allocation6 [shape = 's32[1]{0}', space=sflag, size = 0x4, scoped, tag = 'scoped memory for tpu_custom_call.1']
    #allocation7 [shape = 'u8[1024]{0}', space=vmem, size = 0x400, scoped, tag = 'output window, operand 0, single buffered']
    %11 = vsyncpa [#allocation3], 0
    %12 = vsyncpa [#allocation6], 0
    %13 = vsyncpa [#allocation4], 0
    // Predicated region
    $region2: #{tpu_custom_call.1} parent=1 // pred_check
      _
    $region3: #{tpu_custom_call.1} parent=1 // pred_check_branch
      %15 = sbr.rel (0) target = $region5
    $region4: #{tpu_custom_call.1} parent=1 // pred_region
      _
    $region5: #{tpu_custom_call.1} parent=1 // pred_fallthru
      _
    // Predicated region
    $region6: #{tpu_custom_call.1} parent=1 // pred_check
      _
    $region7: #{tpu_custom_call.1} parent=1 // pred_check_branch
      %17 = sbr.rel (0) target = $region9
    $region8: #{tpu_custom_call.1} parent=1 // pred_region
      %s19 = ssub.s32 2048, 2048
      %20 = vsyncadd [#allocation3], %s19
      %s21 = sshll.u32 [#allocation2], 4
      %s22 = int_to_ptr.vmem [resolvable:$true] %s21
      %27 = dma.hbm_to_vmem [thread:$0]  %s1, 2048, %s22, [#allocation3], 256, 256, 16
    $region9: #{tpu_custom_call.1} parent=1 // pred_fallthru
      _
    // Predicated region
    $region10: #{tpu_custom_call.1} parent=1 // pred_check
      _
    $region11: #{tpu_custom_call.1} parent=1 // pred_check_branch
      %29 = sbr.rel (0) target = $region13
    $region12: #{tpu_custom_call.1} parent=1 // pred_region
      _
    $region13: #{tpu_custom_call.1} parent=1 // pred_fallthru
      _
    // Predicated region
    $region14: #{tpu_custom_call.1} parent=1 // pred_check
      _
    $region15: #{tpu_custom_call.1} parent=1 // pred_check_branch
      %31 = sbr.rel (0) target = $region17
    $region16: #{tpu_custom_call.1} parent=1 // pred_region
      %s33 = ssub.s32 2048, 2048
      %34 = vsyncadd [#allocation6], %s33
      %s35 = sshll.u32 [#allocation5], 4
      %s36 = int_to_ptr.vmem [resolvable:$true] %s35
      %41 = dma.hbm_to_vmem [thread:$0]  %s3, 2048, %s36, [#allocation6], 256, 256, 16
    $region17: #{tpu_custom_call.1} parent=1 // pred_fallthru
      _
    // Predicated region
    $region18: #{tpu_custom_call.1} parent=1 // pred_check
      _
    $region19: #{tpu_custom_call.1} parent=1 // pred_check_branch
      %43 = sbr.rel (0) target = $region21
    $region20: #{tpu_custom_call.1} parent=1 // pred_region
      _
    $region21: #{tpu_custom_call.1} parent=1 // pred_fallthru
      _
    // Predicated region
    $region22: #{tpu_custom_call.1} parent=1 // pred_check
      _
    $region23: #{tpu_custom_call.1} parent=1 // pred_check_branch
      %45 = sbr.rel (0) target = $region25
    $region24: #{tpu_custom_call.1} parent=1 // pred_region
      _
    $region25: #{tpu_custom_call.1} parent=1 // pred_fallthru
      _
    // Predicated region
    $region26: #{tpu_custom_call.1} parent=1 // pred_check
      _
    $region27: #{tpu_custom_call.1} parent=1 // pred_check_branch
      %47 = sbr.rel (0) target = $region29
    $region28: #{tpu_custom_call.1} parent=1 // pred_region
      %48 = dma.done [#allocation3], 2048
    $region29: #{tpu_custom_call.1} parent=1 // pred_fallthru
      _
    // Predicated region
    $region30: #{tpu_custom_call.1} parent=1 // pred_check
      _
    $region31: #{tpu_custom_call.1} parent=1 // pred_check_branch
      %50 = sbr.rel (0) target = $region33
    $region32: #{tpu_custom_call.1} parent=1 // pred_region
      %51 = dma.done [#allocation6], 2048
    $region33: #{tpu_custom_call.1} parent=1 // pred_fallthru
      _
    %v52 = vld [vmem:[%s0] sm:$0xff]
    %v53 = vld [vmem:[%s0 + $0x8] sm:$0xff]
    %v54 = vld [vmem:[#allocation2] sm:$0xff]
    %v55 = vld [vmem:[#allocation2 + $0x8] sm:$0xff]
    %v56 = vld [vmem:[#allocation2 + $0x10] sm:$0xff]
    %v57 = vld [vmem:[#allocation2 + $0x18] sm:$0xff]
    %v58 = vld [vmem:[#allocation2 + $0x20] sm:$0xff]
    %v59 = vld [vmem:[#allocation2 + $0x28] sm:$0xff]
    %v60 = vld [vmem:[#allocation2 + $0x30] sm:$0xff]
    %v61 = vld [vmem:[#allocation2 + $0x38] sm:$0xff]
    %v62 = vld [vmem:[#allocation2 + $0x40] sm:$0xff]
    %v63 = vld [vmem:[#allocation2 + $0x48] sm:$0xff]
    %v64 = vld [vmem:[#allocation2 + $0x50] sm:$0xff]
    %v65 = vld [vmem:[#allocation2 + $0x58] sm:$0xff]
    %v66 = vld [vmem:[#allocation2 + $0x60] sm:$0xff]
    %v67 = vld [vmem:[#allocation2 + $0x68] sm:$0xff]
    %v68 = vld [vmem:[#allocation2 + $0x70] sm:$0xff]
    %v69 = vld [vmem:[#allocation2 + $0x78] sm:$0xff]
    %v70 = vld [vmem:[%s2] sm:$0x3]
    %v72 = vlaneseq
    %v73 = vshrl.u32 %v72, 7
    %v74 = vsub.s32 0, %v73
    %v75 = vrot.slane %v70, %v74
    %v76 = vlaneseq
    %v77 = vshrl.u32 %v76, 7
    %v78 = vsub.s32 1, %v77
    %v79 = vrot.slane %v70, %v78
    %vm82 = vcmask 523264
    %v84 = vsel %vm82, %v52, 0
    %v87 = vsel %vm82, %v53, 0
    %89 = vmatprep.subr.mxu0 %v55
    %90 = vmatpush1.msra.mxu0 %v54
    %91 = vmatprep.subr.mxu0 %v57
    %92 = vmatpush1.msra.mxu0 %v56
    %93 = vmatprep.subr.mxu0 %v59
    %94 = vmatpush1.msra.mxu0 %v58
    %95 = vmatprep.subr.mxu0 %v61
    %96 = vmatpush1.msra.mxu0 %v60
    %97 = vmatprep.subr.mxu0 %v63
    %98 = vmatpush1.msra.mxu0 %v62
    %99 = vmatprep.subr.mxu0 %v65
    %100 = vmatpush1.msra.mxu0 %v64
    %101 = vmatprep.subr.mxu0 %v67
    %102 = vmatpush1.msra.mxu0 %v66
    %103 = vmatprep.subr.mxu0 %v69
    %104 = vmatpush1.msra.mxu0 %v68
    %105 = vmatprep.subr.mxu0 0.0
    %106 = vmatpush1.msra.mxu0 0.0
    %107 = vmatprep.subr.mxu0 0.0
    %108 = vmatpush1.msra.mxu0 0.0
    %109 = vmatprep.subr.mxu0 0.0
    %110 = vmatpush1.msra.mxu0 0.0
    %111 = vmatprep.subr.mxu0 0.0
    %112 = vmatpush1.msra.mxu0 0.0
    %113 = vmatprep.subr.mxu0 0.0
    %114 = vmatpush1.msra.mxu0 0.0
    %115 = vmatprep.subr.mxu0 0.0
    %116 = vmatpush1.msra.mxu0 0.0
    %117 = vmatprep.subr.mxu0 0.0
    %118 = vmatpush1.msra.mxu0 0.0
    %119 = vmatprep.subr.mxu0 0.0
    %120 = vmatpush1.msra.mxu0 0.0
    %121 = vmatprep.subr.mxu0 0.0
    %122 = vmatpush1.msra.mxu0 0.0
    %123 = vmatprep.subr.mxu0 0.0
    %124 = vmatpush1.msra.mxu0 0.0
    %125 = vmatprep.subr.mxu0 0.0
    %126 = vmatpush1.msra.mxu0 0.0
    %127 = vmatprep.subr.mxu0 0.0
    %128 = vmatpush1.msra.mxu0 0.0
    %129 = vmatprep.subr.mxu0 0.0
    %130 = vmatpush1.msra.mxu0 0.0
    %131 = vmatprep.subr.mxu0 0.0
    %132 = vmatpush1.msra.mxu0 0.0
    %133 = vmatprep.subr.mxu0 0.0
    %134 = vmatpush1.msra.mxu0 0.0
    %135 = vmatprep.subr.mxu0 0.0
    %136 = vmatpush1.msra.mxu0 0.0
    %137 = vmatprep.subr.mxu0 0.0
    %138 = vmatpush1.msra.mxu0 0.0
    %139 = vmatprep.subr.mxu0 0.0
    %140 = vmatpush1.msra.mxu0 0.0
    %141 = vmatprep.subr.mxu0 0.0
    %142 = vmatpush1.msra.mxu0 0.0
    %143 = vmatprep.subr.mxu0 0.0
    %144 = vmatpush1.msra.mxu0 0.0
    %145 = vmatprep.subr.mxu0 0.0
    %146 = vmatpush1.msra.mxu0 0.0
    %147 = vmatprep.subr.mxu0 0.0
    %148 = vmatpush1.msra.mxu0 0.0
    %149 = vmatprep.subr.mxu0 0.0
    %150 = vmatpush1.msra.mxu0 0.0
    %151 = vmatprep.subr.mxu0 0.0
    %152 = vmatpush1.msra.mxu0 0.0
    %153 = vmatprep.mubr.f32.mxu0 0.0
    %154 = vmatmul.mubr.f32.gmra.mrb[0].mxu0 %v84
    %v155 = vpop.f32.mrb[0].mxu0
    %v156 = vadd.f32 %v75, %v155
    %v157 = vpop.f32.mrb[0].mxu0
    %v158 = vadd.f32 %v79, %v157
    %159 = vmatprep.mubr.f32.mxu0 0.0
    %160 = vmatmul.mubr.f32.gmra.mrb[0].mxu0 %v87
    %v161 = vpop.f32.mrb[0].mxu0
    %v162 = vadd.f32 %v75, %v161
    %v163 = vpop.f32.mrb[0].mxu0
    %v164 = vadd.f32 %v79, %v163
    %165 = vdwg.mxu0
    %v166 = vld [vmem:[#allocation5] sm:$0xff]
    %v167 = vld [vmem:[#allocation5 + $0x8] sm:$0xff]
    %v168 = vld [vmem:[#allocation5 + $0x10] sm:$0xff]
    %v169 = vld [vmem:[#allocation5 + $0x18] sm:$0xff]
    %v170 = vld [vmem:[#allocation5 + $0x20] sm:$0xff]
    %v171 = vld [vmem:[#allocation5 + $0x28] sm:$0xff]
    %v172 = vld [vmem:[#allocation5 + $0x30] sm:$0xff]
    %v173 = vld [vmem:[#allocation5 + $0x38] sm:$0xff]
    %v174 = vld [vmem:[#allocation5 + $0x40] sm:$0xff]
    %v175 = vld [vmem:[#allocation5 + $0x48] sm:$0xff]
    %v176 = vld [vmem:[#allocation5 + $0x50] sm:$0xff]
    %v177 = vld [vmem:[#allocation5 + $0x58] sm:$0xff]
    %v178 = vld [vmem:[#allocation5 + $0x60] sm:$0xff]
    %v179 = vld [vmem:[#allocation5 + $0x68] sm:$0xff]
    %v180 = vld [vmem:[#allocation5 + $0x70] sm:$0xff]
    %v181 = vld [vmem:[#allocation5 + $0x78] sm:$0xff]
    %v183 = vsel %vm82, 0.0, 0
    %185 = vmatprep.subr.mxu0 %v167
    %186 = vmatpush1.msra.mxu0 %v166
    %187 = vmatprep.subr.mxu0 %v169
    %188 = vmatpush1.msra.mxu0 %v168
    %189 = vmatprep.subr.mxu0 %v171
    %190 = vmatpush1.msra.mxu0 %v170
    %191 = vmatprep.subr.mxu0 %v173
    %192 = vmatpush1.msra.mxu0 %v172
    %193 = vmatprep.subr.mxu0 %v175
    %194 = vmatpush1.msra.mxu0 %v174
    %195 = vmatprep.subr.mxu0 %v177
    %196 = vmatpush1.msra.mxu0 %v176
    %197 = vmatprep.subr.mxu0 %v179
    %198 = vmatpush1.msra.mxu0 %v178
    %199 = vmatprep.subr.mxu0 %v181
    %200 = vmatpush1.msra.mxu0 %v180
    %201 = vmatprep.subr.mxu0 0.0
    %202 = vmatpush1.msra.mxu0 0.0
    %203 = vmatprep.subr.mxu0 0.0
    %204 = vmatpush1.msra.mxu0 0.0
    %205 = vmatprep.subr.mxu0 0.0
    %206 = vmatpush1.msra.mxu0 0.0
    %207 = vmatprep.subr.mxu0 0.0
    %208 = vmatpush1.msra.mxu0 0.0
    %209 = vmatprep.subr.mxu0 0.0
    %210 = vmatpush1.msra.mxu0 0.0
    %211 = vmatprep.subr.mxu0 0.0
    %212 = vmatpush1.msra.mxu0 0.0
    %213 = vmatprep.subr.mxu0 0.0
    %214 = vmatpush1.msra.mxu0 0.0
    %215 = vmatprep.subr.mxu0 0.0
    %216 = vmatpush1.msra.mxu0 0.0
    %217 = vmatprep.subr.mxu0 0.0
    %218 = vmatpush1.msra.mxu0 0.0
    %219 = vmatprep.subr.mxu0 0.0
    %220 = vmatpush1.msra.mxu0 0.0
    %221 = vmatprep.subr.mxu0 0.0
    %222 = vmatpush1.msra.mxu0 0.0
    %223 = vmatprep.subr.mxu0 0.0
    %224 = vmatpush1.msra.mxu0 0.0
    %225 = vmatprep.subr.mxu0 0.0
    %226 = vmatpush1.msra.mxu0 0.0
    %227 = vmatprep.subr.mxu0 0.0
    %228 = vmatpush1.msra.mxu0 0.0
    %229 = vmatprep.subr.mxu0 0.0
    %230 = vmatpush1.msra.mxu0 0.0
    %231 = vmatprep.subr.mxu0 0.0
    %232 = vmatpush1.msra.mxu0 0.0
    %233 = vmatprep.subr.mxu0 0.0
    %234 = vmatpush1.msra.mxu0 0.0
    %235 = vmatprep.subr.mxu0 0.0
    %236 = vmatpush1.msra.mxu0 0.0
    %237 = vmatprep.subr.mxu0 0.0
    %238 = vmatpush1.msra.mxu0 0.0
    %239 = vmatprep.subr.mxu0 0.0
    %240 = vmatpush1.msra.mxu0 0.0
    %241 = vmatprep.subr.mxu0 0.0
    %242 = vmatpush1.msra.mxu0 0.0
    %243 = vmatprep.subr.mxu0 0.0
    %244 = vmatpush1.msra.mxu0 0.0
    %245 = vmatprep.subr.mxu0 0.0
    %246 = vmatpush1.msra.mxu0 0.0
    %247 = vmatprep.subr.mxu0 0.0
    %248 = vmatpush1.msra.mxu0 0.0
    %249 = vmatprep.mubr.f32.mxu0 0.0
    %250 = vmatmul.mubr.f32.gmra.mrb[0].mxu0 %v183
    %v251 = vpop.f32.mrb[0].mxu0
    %v252 = vadd.f32 0.0, %v251
    %v253 = vpop.f32.mrb[0].mxu0
    %v254 = vadd.f32 0.0, %v253
    %255 = vdwg.mxu0
    %v256 = vadd.f32 %v156, %v252
    %v257 = vadd.f32 %v158, %v254
    %v258 = vxor.u32 %v256, 2147483648
    %v259 = vxor.u32 %v257, 2147483648
    %v260 = vmul.f32 %v258, 1.442695
    %v261 = vpow.pop %v260
    %v262 = vmul.f32 %v259, 1.442695
    %v263 = vpow.pop %v262
    %v264 = vadd.f32 %v261, 1.0
    %v265 = vadd.f32 %v263, 1.0
    %v266 = vrcp.pop %v264
    %v267 = vmul.f32 1.0, %v266
    %v268 = vrcp.pop %v265
    %v269 = vmul.f32 1.0, %v268
    %v270 = vmul.f32 %v269, 2.0
    %v271 = vsub.f32 %v270, 1.0
    %v272 = vmul.f32 %v267, 0.0
    %v273 = vmul.f32 %v267, %v271
    %275 = vrot.lane.b32.xlu0 %v273, 64
    %v276 = vpop.permute.xlu0 %275
    %v278 = vadd.f32 %v272, %v276
    %v279 = vtanh.pop %v278
    %v280 = vmul.f32 %v269, %v279
    %282 = vrot.lane.b32.xlu0 %v280, 64
    %v283 = vpop.permute.xlu0 %282
    %v284 = vsel %vm82, %v283, 0
    %286 = vmatprep.subr.mxu0 %v167
    %287 = vmatpush1.msra.mxu0 %v166
    %288 = vmatprep.subr.mxu0 %v169
    %289 = vmatpush1.msra.mxu0 %v168
    %290 = vmatprep.subr.mxu0 %v171
    %291 = vmatpush1.msra.mxu0 %v170
    %292 = vmatprep.subr.mxu0 %v173
    %293 = vmatpush1.msra.mxu0 %v172
    %294 = vmatprep.subr.mxu0 %v175
    %295 = vmatpush1.msra.mxu0 %v174
    %296 = vmatprep.subr.mxu0 %v177
    %297 = vmatpush1.msra.mxu0 %v176
    %298 = vmatprep.subr.mxu0 %v179
    %299 = vmatpush1.msra.mxu0 %v178
    %300 = vmatprep.subr.mxu0 %v181
    %301 = vmatpush1.msra.mxu0 %v180
    %302 = vmatprep.subr.mxu0 0.0
    %303 = vmatpush1.msra.mxu0 0.0
    %304 = vmatprep.subr.mxu0 0.0
    %305 = vmatpush1.msra.mxu0 0.0
    %306 = vmatprep.subr.mxu0 0.0
    %307 = vmatpush1.msra.mxu0 0.0
    %308 = vmatprep.subr.mxu0 0.0
    %309 = vmatpush1.msra.mxu0 0.0
    %310 = vmatprep.subr.mxu0 0.0
    %311 = vmatpush1.msra.mxu0 0.0
    %312 = vmatprep.subr.mxu0 0.0
    %313 = vmatpush1.msra.mxu0 0.0
    %314 = vmatprep.subr.mxu0 0.0
    %315 = vmatpush1.msra.mxu0 0.0
    %316 = vmatprep.subr.mxu0 0.0
    %317 = vmatpush1.msra.mxu0 0.0
    %318 = vmatprep.subr.mxu0 0.0
    %319 = vmatpush1.msra.mxu0 0.0
    %320 = vmatprep.subr.mxu0 0.0
    %321 = vmatpush1.msra.mxu0 0.0
    %322 = vmatprep.subr.mxu0 0.0
    %323 = vmatpush1.msra.mxu0 0.0
    %324 = vmatprep.subr.mxu0 0.0
    %325 = vmatpush1.msra.mxu0 0.0
    %326 = vmatprep.subr.mxu0 0.0
    %327 = vmatpush1.msra.mxu0 0.0
    %328 = vmatprep.subr.mxu0 0.0
    %329 = vmatpush1.msra.mxu0 0.0
    %330 = vmatprep.subr.mxu0 0.0
    %331 = vmatpush1.msra.mxu0 0.0
    %332 = vmatprep.subr.mxu0 0.0
    %333 = vmatpush1.msra.mxu0 0.0
    %334 = vmatprep.subr.mxu0 0.0
    %335 = vmatpush1.msra.mxu0 0.0
    %336 = vmatprep.subr.mxu0 0.0
    %337 = vmatpush1.msra.mxu0 0.0
    %338 = vmatprep.subr.mxu0 0.0
    %339 = vmatpush1.msra.mxu0 0.0
    %340 = vmatprep.subr.mxu0 0.0
    %341 = vmatpush1.msra.mxu0 0.0
    %342 = vmatprep.subr.mxu0 0.0
    %343 = vmatpush1.msra.mxu0 0.0
    %344 = vmatprep.subr.mxu0 0.0
    %345 = vmatpush1.msra.mxu0 0.0
    %346 = vmatprep.subr.mxu0 0.0
    %347 = vmatpush1.msra.mxu0 0.0
    %348 = vmatprep.subr.mxu0 0.0
    %349 = vmatpush1.msra.mxu0 0.0
    %350 = vmatprep.mubr.f32.mxu0 0.0
    %351 = vmatmul.mubr.f32.gmra.mrb[0].mxu0 %v284
    %v352 = vpop.f32.mrb[0].mxu0
    %v353 = vadd.f32 0.0, %v352
    %v354 = vpop.f32.mrb[0].mxu0
    %v355 = vadd.f32 0.0, %v354
    %356 = vdwg.mxu0
    %v359 = vrot.slane %v353, 6
    %v360 = vrot.slane %v355, 6
    %v363 = vadd.f32 %v156, %v359
    %v364 = vadd.f32 %v158, %v360
    %v365 = vxor.u32 %v363, 2147483648
    %v366 = vxor.u32 %v364, 2147483648
    %v367 = vmul.f32 %v365, 1.442695
    %v368 = vpow.pop %v367
    %v369 = vmul.f32 %v366, 1.442695
    %v370 = vpow.pop %v369
    %v371 = vadd.f32 %v368, 1.0
    %v372 = vadd.f32 %v370, 1.0
    %v373 = vrcp.pop %v371
    %v374 = vmul.f32 1.0, %v373
    %v375 = vrcp.pop %v372
    %v376 = vmul.f32 1.0, %v375
    %v377 = vmul.f32 %v376, 2.0
    %v378 = vsub.f32 %v377, 1.0
    %v380 = vrot.slane %v278, 6
    %v382 = vmul.f32 %v374, %v380
    %v383 = vmul.f32 %v374, %v378
    %385 = vrot.lane.b32.xlu0 %v383, 64
    %v386 = vpop.permute.xlu0 %385
    %v388 = vadd.f32 %v382, %v386
    %v389 = vtanh.pop %v388
    %v390 = vmul.f32 %v376, %v389
    %v392 = vrot.slane %v390, 2
    %v394 = vmax.f32 %v280, %v392
    %395 = vrot.lane.b32.xlu0 %v392, 64
    %v396 = vpop.permute.xlu0 %395
    %v397 = vsel %vm82, %v396, 0
    %399 = vmatprep.subr.mxu0 %v167
    %400 = vmatpush1.msra.mxu0 %v166
    %401 = vmatprep.subr.mxu0 %v169
    %402 = vmatpush1.msra.mxu0 %v168
    %403 = vmatprep.subr.mxu0 %v171
    %404 = vmatpush1.msra.mxu0 %v170
    %405 = vmatprep.subr.mxu0 %v173
    %406 = vmatpush1.msra.mxu0 %v172
    %407 = vmatprep.subr.mxu0 %v175
    %408 = vmatpush1.msra.mxu0 %v174
    %409 = vmatprep.subr.mxu0 %v177
    %410 = vmatpush1.msra.mxu0 %v176
    %411 = vmatprep.subr.mxu0 %v179
    %412 = vmatpush1.msra.mxu0 %v178
    %413 = vmatprep.subr.mxu0 %v181
    %414 = vmatpush1.msra.mxu0 %v180
    %415 = vmatprep.subr.mxu0 0.0
    %416 = vmatpush1.msra.mxu0 0.0
    %417 = vmatprep.subr.mxu0 0.0
    %418 = vmatpush1.msra.mxu0 0.0
    %419 = vmatprep.subr.mxu0 0.0
    %420 = vmatpush1.msra.mxu0 0.0
    %421 = vmatprep.subr.mxu0 0.0
    %422 = vmatpush1.msra.mxu0 0.0
    %423 = vmatprep.subr.mxu0 0.0
    %424 = vmatpush1.msra.mxu0 0.0
    %425 = vmatprep.subr.mxu0 0.0
    %426 = vmatpush1.msra.mxu0 0.0
    %427 = vmatprep.subr.mxu0 0.0
    %428 = vmatpush1.msra.mxu0 0.0
    %429 = vmatprep.subr.mxu0 0.0
    %430 = vmatpush1.msra.mxu0 0.0
    %431 = vmatprep.subr.mxu0 0.0
    %432 = vmatpush1.msra.mxu0 0.0
    %433 = vmatprep.subr.mxu0 0.0
    %434 = vmatpush1.msra.mxu0 0.0
    %435 = vmatprep.subr.mxu0 0.0
    %436 = vmatpush1.msra.mxu0 0.0
    %437 = vmatprep.subr.mxu0 0.0
    %438 = vmatpush1.msra.mxu0 0.0
    %439 = vmatprep.subr.mxu0 0.0
    %440 = vmatpush1.msra.mxu0 0.0
    %441 = vmatprep.subr.mxu0 0.0
    %442 = vmatpush1.msra.mxu0 0.0
    %443 = vmatprep.subr.mxu0 0.0
    %444 = vmatpush1.msra.mxu0 0.0
    %445 = vmatprep.subr.mxu0 0.0
    %446 = vmatpush1.msra.mxu0 0.0
    %447 = vmatprep.subr.mxu0 0.0
    %448 = vmatpush1.msra.mxu0 0.0
    %449 = vmatprep.subr.mxu0 0.0
    %450 = vmatpush1.msra.mxu0 0.0
    %451 = vmatprep.subr.mxu0 0.0
    %452 = vmatpush1.msra.mxu0 0.0
    %453 = vmatprep.subr.mxu0 0.0
    %454 = vmatpush1.msra.mxu0 0.0
    %455 = vmatprep.subr.mxu0 0.0
    %456 = vmatpush1.msra.mxu0 0.0
    %457 = vmatprep.subr.mxu0 0.0
    %458 = vmatpush1.msra.mxu0 0.0
    %459 = vmatprep.subr.mxu0 0.0
    %460 = vmatpush1.msra.mxu0 0.0
    %461 = vmatprep.subr.mxu0 0.0
    %462 = vmatpush1.msra.mxu0 0.0
    %463 = vmatprep.mubr.f32.mxu0 0.0
    %464 = vmatmul.mubr.f32.gmra.mrb[0].mxu0 %v397
    %v465 = vpop.f32.mrb[0].mxu0
    %v466 = vadd.f32 0.0, %v465
    %v467 = vpop.f32.mrb[0].mxu0
    %v468 = vadd.f32 0.0, %v467
    %469 = vdwg.mxu0
    %v472 = vrot.slane %v466, 4
    %v473 = vrot.slane %v468, 4
    %v476 = vadd.f32 %v156, %v472
    %v477 = vadd.f32 %v158, %v473
    %v478 = vxor.u32 %v476, 2147483648
    %v479 = vxor.u32 %v477, 2147483648
    %v480 = vmul.f32 %v478, 1.442695
    %v481 = vpow.pop %v480
    %v482 = vmul.f32 %v479, 1.442695
    %v483 = vpow.pop %v482
    %v484 = vadd.f32 %v481, 1.0
    %v485 = vadd.f32 %v483, 1.0
    %v486 = vrcp.pop %v484
    %v487 = vmul.f32 1.0, %v486
    %v488 = vrcp.pop %v485
    %v489 = vmul.f32 1.0, %v488
    %v490 = vmul.f32 %v489, 2.0
    %v491 = vsub.f32 %v490, 1.0
    %v493 = vrot.slane %v388, 6
    %v495 = vmul.f32 %v487, %v493
    %v496 = vmul.f32 %v487, %v491
    %498 = vrot.lane.b32.xlu0 %v496, 64
    %v499 = vpop.permute.xlu0 %498
    %v501 = vadd.f32 %v495, %v499
    %v502 = vtanh.pop %v501
    %v503 = vmul.f32 %v489, %v502
    %v505 = vrot.slane %v503, 4
    %v507 = vmax.f32 %v394, %v505
    %508 = vrot.lane.b32.xlu0 %v505, 64
    %v509 = vpop.permute.xlu0 %508
    %v510 = vsel %vm82, %v509, 0
    %512 = vmatprep.subr.mxu0 %v167
    %513 = vmatpush1.msra.mxu0 %v166
    %514 = vmatprep.subr.mxu0 %v169
    %515 = vmatpush1.msra.mxu0 %v168
    %516 = vmatprep.subr.mxu0 %v171
    %517 = vmatpush1.msra.mxu0 %v170
    %518 = vmatprep.subr.mxu0 %v173
    %519 = vmatpush1.msra.mxu0 %v172
    %520 = vmatprep.subr.mxu0 %v175
    %521 = vmatpush1.msra.mxu0 %v174
    %522 = vmatprep.subr.mxu0 %v177
    %523 = vmatpush1.msra.mxu0 %v176
    %524 = vmatprep.subr.mxu0 %v179
    %525 = vmatpush1.msra.mxu0 %v178
    %526 = vmatprep.subr.mxu0 %v181
    %527 = vmatpush1.msra.mxu0 %v180
    %528 = vmatprep.subr.mxu0 0.0
    %529 = vmatpush1.msra.mxu0 0.0
    %530 = vmatprep.subr.mxu0 0.0
    %531 = vmatpush1.msra.mxu0 0.0
    %532 = vmatprep.subr.mxu0 0.0
    %533 = vmatpush1.msra.mxu0 0.0
    %534 = vmatprep.subr.mxu0 0.0
    %535 = vmatpush1.msra.mxu0 0.0
    %536 = vmatprep.subr.mxu0 0.0
    %537 = vmatpush1.msra.mxu0 0.0
    %538 = vmatprep.subr.mxu0 0.0
    %539 = vmatpush1.msra.mxu0 0.0
    %540 = vmatprep.subr.mxu0 0.0
    %541 = vmatpush1.msra.mxu0 0.0
    %542 = vmatprep.subr.mxu0 0.0
    %543 = vmatpush1.msra.mxu0 0.0
    %544 = vmatprep.subr.mxu0 0.0
    %545 = vmatpush1.msra.mxu0 0.0
    %546 = vmatprep.subr.mxu0 0.0
    %547 = vmatpush1.msra.mxu0 0.0
    %548 = vmatprep.subr.mxu0 0.0
    %549 = vmatpush1.msra.mxu0 0.0
    %550 = vmatprep.subr.mxu0 0.0
    %551 = vmatpush1.msra.mxu0 0.0
    %552 = vmatprep.subr.mxu0 0.0
    %553 = vmatpush1.msra.mxu0 0.0
    %554 = vmatprep.subr.mxu0 0.0
    %555 = vmatpush1.msra.mxu0 0.0
    %556 = vmatprep.subr.mxu0 0.0
    %557 = vmatpush1.msra.mxu0 0.0
    %558 = vmatprep.subr.mxu0 0.0
    %559 = vmatpush1.msra.mxu0 0.0
    %560 = vmatprep.subr.mxu0 0.0
    %561 = vmatpush1.msra.mxu0 0.0
    %562 = vmatprep.subr.mxu0 0.0
    %563 = vmatpush1.msra.mxu0 0.0
    %564 = vmatprep.subr.mxu0 0.0
    %565 = vmatpush1.msra.mxu0 0.0
    %566 = vmatprep.subr.mxu0 0.0
    %567 = vmatpush1.msra.mxu0 0.0
    %568 = vmatprep.subr.mxu0 0.0
    %569 = vmatpush1.msra.mxu0 0.0
    %570 = vmatprep.subr.mxu0 0.0
    %571 = vmatpush1.msra.mxu0 0.0
    %572 = vmatprep.subr.mxu0 0.0
    %573 = vmatpush1.msra.mxu0 0.0
    %574 = vmatprep.subr.mxu0 0.0
    %575 = vmatpush1.msra.mxu0 0.0
    %576 = vmatprep.mubr.f32.mxu0 0.0
    %577 = vmatmul.mubr.f32.gmra.mrb[0].mxu0 %v510
    %v578 = vpop.f32.mrb[0].mxu0
    %v579 = vadd.f32 0.0, %v578
    %v580 = vpop.f32.mrb[0].mxu0
    %v581 = vadd.f32 0.0, %v580
    %582 = vdwg.mxu0
    %v585 = vrot.slane %v579, 2
    %v586 = vrot.slane %v581, 2
    %v589 = vadd.f32 %v156, %v585
    %v590 = vadd.f32 %v158, %v586
    %v591 = vxor.u32 %v589, 2147483648
    %v592 = vxor.u32 %v590, 2147483648
    %v593 = vmul.f32 %v591, 1.442695
    %v594 = vpow.pop %v593
    %v595 = vmul.f32 %v592, 1.442695
    %v596 = vpow.pop %v595
    %v597 = vadd.f32 %v594, 1.0
    %v598 = vadd.f32 %v596, 1.0
    %v599 = vrcp.pop %v597
    %v600 = vmul.f32 1.0, %v599
    %v601 = vrcp.pop %v598
    %v602 = vmul.f32 1.0, %v601
    %v603 = vmul.f32 %v602, 2.0
    %v604 = vsub.f32 %v603, 1.0
    %v606 = vrot.slane %v501, 6
    %v608 = vmul.f32 %v600, %v606
    %v609 = vmul.f32 %v600, %v604
    %611 = vrot.lane.b32.xlu0 %v609, 64
    %v612 = vpop.permute.xlu0 %611
    %v614 = vadd.f32 %v608, %v612
    %v615 = vtanh.pop %v614
    %v616 = vmul.f32 %v602, %v615
    %v618 = vrot.slane %v616, 6
    %v620 = vmax.f32 %v507, %v618
    %621 = vrot.lane.b32.xlu0 %v618, 64
    %v622 = vpop.permute.xlu0 %621
    %v623 = vsel %vm82, %v622, 0
    %625 = vmatprep.subr.mxu0 %v167
    %626 = vmatpush1.msra.mxu0 %v166
    %627 = vmatprep.subr.mxu0 %v169
    %628 = vmatpush1.msra.mxu0 %v168
    %629 = vmatprep.subr.mxu0 %v171
    %630 = vmatpush1.msra.mxu0 %v170
    %631 = vmatprep.subr.mxu0 %v173
    %632 = vmatpush1.msra.mxu0 %v172
    %633 = vmatprep.subr.mxu0 %v175
    %634 = vmatpush1.msra.mxu0 %v174
    %635 = vmatprep.subr.mxu0 %v177
    %636 = vmatpush1.msra.mxu0 %v176
    %637 = vmatprep.subr.mxu0 %v179
    %638 = vmatpush1.msra.mxu0 %v178
    %639 = vmatprep.subr.mxu0 %v181
    %640 = vmatpush1.msra.mxu0 %v180
    %641 = vmatprep.subr.mxu0 0.0
    %642 = vmatpush1.msra.mxu0 0.0
    %643 = vmatprep.subr.mxu0 0.0
    %644 = vmatpush1.msra.mxu0 0.0
    %645 = vmatprep.subr.mxu0 0.0
    %646 = vmatpush1.msra.mxu0 0.0
    %647 = vmatprep.subr.mxu0 0.0
    %648 = vmatpush1.msra.mxu0 0.0
    %649 = vmatprep.subr.mxu0 0.0
    %650 = vmatpush1.msra.mxu0 0.0
    %651 = vmatprep.subr.mxu0 0.0
    %652 = vmatpush1.msra.mxu0 0.0
    %653 = vmatprep.subr.mxu0 0.0
    %654 = vmatpush1.msra.mxu0 0.0
    %655 = vmatprep.subr.mxu0 0.0
    %656 = vmatpush1.msra.mxu0 0.0
    %657 = vmatprep.subr.mxu0 0.0
    %658 = vmatpush1.msra.mxu0 0.0
    %659 = vmatprep.subr.mxu0 0.0
    %660 = vmatpush1.msra.mxu0 0.0
    %661 = vmatprep.subr.mxu0 0.0
    %662 = vmatpush1.msra.mxu0 0.0
    %663 = vmatprep.subr.mxu0 0.0
    %664 = vmatpush1.msra.mxu0 0.0
    %665 = vmatprep.subr.mxu0 0.0
    %666 = vmatpush1.msra.mxu0 0.0
    %667 = vmatprep.subr.mxu0 0.0
    %668 = vmatpush1.msra.mxu0 0.0
    %669 = vmatprep.subr.mxu0 0.0
    %670 = vmatpush1.msra.mxu0 0.0
    %671 = vmatprep.subr.mxu0 0.0
    %672 = vmatpush1.msra.mxu0 0.0
    %673 = vmatprep.subr.mxu0 0.0
    %674 = vmatpush1.msra.mxu0 0.0
    %675 = vmatprep.subr.mxu0 0.0
    %676 = vmatpush1.msra.mxu0 0.0
    %677 = vmatprep.subr.mxu0 0.0
    %678 = vmatpush1.msra.mxu0 0.0
    %679 = vmatprep.subr.mxu0 0.0
    %680 = vmatpush1.msra.mxu0 0.0
    %681 = vmatprep.subr.mxu0 0.0
    %682 = vmatpush1.msra.mxu0 0.0
    %683 = vmatprep.subr.mxu0 0.0
    %684 = vmatpush1.msra.mxu0 0.0
    %685 = vmatprep.subr.mxu0 0.0
    %686 = vmatpush1.msra.mxu0 0.0
    %687 = vmatprep.subr.mxu0 0.0
    %688 = vmatpush1.msra.mxu0 0.0
    %689 = vmatprep.mubr.f32.mxu0 0.0
    %690 = vmatmul.mubr.f32.gmra.mrb[0].mxu0 %v623
    %v691 = vpop.f32.mrb[0].mxu0
    %v692 = vadd.f32 0.0, %v691
    %v693 = vpop.f32.mrb[0].mxu0
    %v694 = vadd.f32 0.0, %v693
    %695 = vdwg.mxu0
    %v696 = vadd.f32 %v162, %v692
    %v697 = vadd.f32 %v164, %v694
    %v698 = vxor.u32 %v696, 2147483648
    %v699 = vxor.u32 %v697, 2147483648
    %v700 = vmul.f32 %v698, 1.442695
    %v701 = vpow.pop %v700
    %v702 = vmul.f32 %v699, 1.442695
    %v703 = vpow.pop %v702
    %v704 = vadd.f32 %v701, 1.0
    %v705 = vadd.f32 %v703, 1.0
    %v706 = vrcp.pop %v704
    %v707 = vmul.f32 1.0, %v706
    %v708 = vrcp.pop %v705
    %v709 = vmul.f32 1.0, %v708
    %v710 = vmul.f32 %v709, 2.0
    %v711 = vsub.f32 %v710, 1.0
    %v713 = vrot.slane %v614, 6
    %v715 = vmul.f32 %v707, %v713
    %v716 = vmul.f32 %v707, %v711
    %718 = vrot.lane.b32.xlu0 %v716, 64
    %v719 = vpop.permute.xlu0 %718
    %v721 = vadd.f32 %v715, %v719
    %v722 = vtanh.pop %v721
    %v723 = vmul.f32 %v709, %v722
    %v724 = vmax.f32 %v620, %v723
    %726 = vrot.lane.b32.xlu0 %v723, 64
    %v727 = vpop.permute.xlu0 %726
    %v728 = vsel %vm82, %v727, 0
    %730 = vmatprep.subr.mxu0 %v167
    %731 = vmatpush1.msra.mxu0 %v166
    %732 = vmatprep.subr.mxu0 %v169
    %733 = vmatpush1.msra.mxu0 %v168
    %734 = vmatprep.subr.mxu0 %v171
    %735 = vmatpush1.msra.mxu0 %v170
    %736 = vmatprep.subr.mxu0 %v173
    %737 = vmatpush1.msra.mxu0 %v172
    %738 = vmatprep.subr.mxu0 %v175
    %739 = vmatpush1.msra.mxu0 %v174
    %740 = vmatprep.subr.mxu0 %v177
    %741 = vmatpush1.msra.mxu0 %v176
    %742 = vmatprep.subr.mxu0 %v179
    %743 = vmatpush1.msra.mxu0 %v178
    %744 = vmatprep.subr.mxu0 %v181
    %745 = vmatpush1.msra.mxu0 %v180
    %746 = vmatprep.subr.mxu0 0.0
    %747 = vmatpush1.msra.mxu0 0.0
    %748 = vmatprep.subr.mxu0 0.0
    %749 = vmatpush1.msra.mxu0 0.0
    %750 = vmatprep.subr.mxu0 0.0
    %751 = vmatpush1.msra.mxu0 0.0
    %752 = vmatprep.subr.mxu0 0.0
    %753 = vmatpush1.msra.mxu0 0.0
    %754 = vmatprep.subr.mxu0 0.0
    %755 = vmatpush1.msra.mxu0 0.0
    %756 = vmatprep.subr.mxu0 0.0
    %757 = vmatpush1.msra.mxu0 0.0
    %758 = vmatprep.subr.mxu0 0.0
    %759 = vmatpush1.msra.mxu0 0.0
    %760 = vmatprep.subr.mxu0 0.0
    %761 = vmatpush1.msra.mxu0 0.0
    %762 = vmatprep.subr.mxu0 0.0
    %763 = vmatpush1.msra.mxu0 0.0
    %764 = vmatprep.subr.mxu0 0.0
    %765 = vmatpush1.msra.mxu0 0.0
    %766 = vmatprep.subr.mxu0 0.0
    %767 = vmatpush1.msra.mxu0 0.0
    %768 = vmatprep.subr.mxu0 0.0
    %769 = vmatpush1.msra.mxu0 0.0
    %770 = vmatprep.subr.mxu0 0.0
    %771 = vmatpush1.msra.mxu0 0.0
    %772 = vmatprep.subr.mxu0 0.0
    %773 = vmatpush1.msra.mxu0 0.0
    %774 = vmatprep.subr.mxu0 0.0
    %775 = vmatpush1.msra.mxu0 0.0
    %776 = vmatprep.subr.mxu0 0.0
    %777 = vmatpush1.msra.mxu0 0.0
    %778 = vmatprep.subr.mxu0 0.0
    %779 = vmatpush1.msra.mxu0 0.0
    %780 = vmatprep.subr.mxu0 0.0
    %781 = vmatpush1.msra.mxu0 0.0
    %782 = vmatprep.subr.mxu0 0.0
    %783 = vmatpush1.msra.mxu0 0.0
    %784 = vmatprep.subr.mxu0 0.0
    %785 = vmatpush1.msra.mxu0 0.0
    %786 = vmatprep.subr.mxu0 0.0
    %787 = vmatpush1.msra.mxu0 0.0
    %788 = vmatprep.subr.mxu0 0.0
    %789 = vmatpush1.msra.mxu0 0.0
    %790 = vmatprep.subr.mxu0 0.0
    %791 = vmatpush1.msra.mxu0 0.0
    %792 = vmatprep.subr.mxu0 0.0
    %793 = vmatpush1.msra.mxu0 0.0
    %794 = vmatprep.mubr.f32.mxu0 0.0
    %795 = vmatmul.mubr.f32.gmra.mrb[0].mxu0 %v728
    %v796 = vpop.f32.mrb[0].mxu0
    %v797 = vadd.f32 0.0, %v796
    %v798 = vpop.f32.mrb[0].mxu0
    %v799 = vadd.f32 0.0, %v798
    %800 = vdwg.mxu0
    %v803 = vrot.slane %v797, 6
    %v804 = vrot.slane %v799, 6
    %v807 = vadd.f32 %v162, %v803
    %v808 = vadd.f32 %v164, %v804
    %v809 = vxor.u32 %v807, 2147483648
    %v810 = vxor.u32 %v808, 2147483648
    %v811 = vmul.f32 %v809, 1.442695
    %v812 = vpow.pop %v811
    %v813 = vmul.f32 %v810, 1.442695
    %v814 = vpow.pop %v813
    %v815 = vadd.f32 %v812, 1.0
    %v816 = vadd.f32 %v814, 1.0
    %v817 = vrcp.pop %v815
    %v818 = vmul.f32 1.0, %v817
    %v819 = vrcp.pop %v816
    %v820 = vmul.f32 1.0, %v819
    %v821 = vmul.f32 %v820, 2.0
    %v822 = vsub.f32 %v821, 1.0
    %v824 = vrot.slane %v721, 6
    %v826 = vmul.f32 %v818, %v824
    %v827 = vmul.f32 %v818, %v822
    %829 = vrot.lane.b32.xlu0 %v827, 64
    %v830 = vpop.permute.xlu0 %829
    %v832 = vadd.f32 %v826, %v830
    %v833 = vtanh.pop %v832
    %v834 = vmul.f32 %v820, %v833
    %v836 = vrot.slane %v834, 2
    %v838 = vmax.f32 %v724, %v836
    %839 = vrot.lane.b32.xlu0 %v836, 64
    %v840 = vpop.permute.xlu0 %839
    %v841 = vsel %vm82, %v840, 0
    %843 = vmatprep.subr.mxu0 %v167
    %844 = vmatpush1.msra.mxu0 %v166
    %845 = vmatprep.subr.mxu0 %v169
    %846 = vmatpush1.msra.mxu0 %v168
    %847 = vmatprep.subr.mxu0 %v171
    %848 = vmatpush1.msra.mxu0 %v170
    %849 = vmatprep.subr.mxu0 %v173
    %850 = vmatpush1.msra.mxu0 %v172
    %851 = vmatprep.subr.mxu0 %v175
    %852 = vmatpush1.msra.mxu0 %v174
    %853 = vmatprep.subr.mxu0 %v177
    %854 = vmatpush1.msra.mxu0 %v176
    %855 = vmatprep.subr.mxu0 %v179
    %856 = vmatpush1.msra.mxu0 %v178
    %857 = vmatprep.subr.mxu0 %v181
    %858 = vmatpush1.msra.mxu0 %v180
    %859 = vmatprep.subr.mxu0 0.0
    %860 = vmatpush1.msra.mxu0 0.0
    %861 = vmatprep.subr.mxu0 0.0
    %862 = vmatpush1.msra.mxu0 0.0
    %863 = vmatprep.subr.mxu0 0.0
    %864 = vmatpush1.msra.mxu0 0.0
    %865 = vmatprep.subr.mxu0 0.0
    %866 = vmatpush1.msra.mxu0 0.0
    %867 = vmatprep.subr.mxu0 0.0
    %868 = vmatpush1.msra.mxu0 0.0
    %869 = vmatprep.subr.mxu0 0.0
    %870 = vmatpush1.msra.mxu0 0.0
    %871 = vmatprep.subr.mxu0 0.0
    %872 = vmatpush1.msra.mxu0 0.0
    %873 = vmatprep.subr.mxu0 0.0
    %874 = vmatpush1.msra.mxu0 0.0
    %875 = vmatprep.subr.mxu0 0.0
    %876 = vmatpush1.msra.mxu0 0.0
    %877 = vmatprep.subr.mxu0 0.0
    %878 = vmatpush1.msra.mxu0 0.0
    %879 = vmatprep.subr.mxu0 0.0
    %880 = vmatpush1.msra.mxu0 0.0
    %881 = vmatprep.subr.mxu0 0.0
    %882 = vmatpush1.msra.mxu0 0.0
    %883 = vmatprep.subr.mxu0 0.0
    %884 = vmatpush1.msra.mxu0 0.0
    %885 = vmatprep.subr.mxu0 0.0
    %886 = vmatpush1.msra.mxu0 0.0
    %887 = vmatprep.subr.mxu0 0.0
    %888 = vmatpush1.msra.mxu0 0.0
    %889 = vmatprep.subr.mxu0 0.0
    %890 = vmatpush1.msra.mxu0 0.0
    %891 = vmatprep.subr.mxu0 0.0
    %892 = vmatpush1.msra.mxu0 0.0
    %893 = vmatprep.subr.mxu0 0.0
    %894 = vmatpush1.msra.mxu0 0.0
    %895 = vmatprep.subr.mxu0 0.0
    %896 = vmatpush1.msra.mxu0 0.0
    %897 = vmatprep.subr.mxu0 0.0
    %898 = vmatpush1.msra.mxu0 0.0
    %899 = vmatprep.subr.mxu0 0.0
    %900 = vmatpush1.msra.mxu0 0.0
    %901 = vmatprep.subr.mxu0 0.0
    %902 = vmatpush1.msra.mxu0 0.0
    %903 = vmatprep.subr.mxu0 0.0
    %904 = vmatpush1.msra.mxu0 0.0
    %905 = vmatprep.subr.mxu0 0.0
    %906 = vmatpush1.msra.mxu0 0.0
    %907 = vmatprep.mubr.f32.mxu0 0.0
    %908 = vmatmul.mubr.f32.gmra.mrb[0].mxu0 %v841
    %v909 = vpop.f32.mrb[0].mxu0
    %v910 = vadd.f32 0.0, %v909
    %v911 = vpop.f32.mrb[0].mxu0
    %v912 = vadd.f32 0.0, %v911
    %913 = vdwg.mxu0
    %v916 = vrot.slane %v910, 4
    %v917 = vrot.slane %v912, 4
    %v920 = vadd.f32 %v162, %v916
    %v921 = vadd.f32 %v164, %v917
    %v922 = vxor.u32 %v920, 2147483648
    %v923 = vxor.u32 %v921, 2147483648
    %v924 = vmul.f32 %v922, 1.442695
    %v925 = vpow.pop %v924
    %v926 = vmul.f32 %v923, 1.442695
    %v927 = vpow.pop %v926
    %v928 = vadd.f32 %v925, 1.0
    %v929 = vadd.f32 %v927, 1.0
    %v930 = vrcp.pop %v928
    %v931 = vmul.f32 1.0, %v930
    %v932 = vrcp.pop %v929
    %v933 = vmul.f32 1.0, %v932
    %v934 = vmul.f32 %v933, 2.0
    %v935 = vsub.f32 %v934, 1.0
    %v937 = vrot.slane %v832, 6
    %v939 = vmul.f32 %v931, %v937
    %v940 = vmul.f32 %v931, %v935
    %942 = vrot.lane.b32.xlu0 %v940, 64
    %v943 = vpop.permute.xlu0 %942
    %v945 = vadd.f32 %v939, %v943
    %v946 = vtanh.pop %v945
    %v947 = vmul.f32 %v933, %v946
    %v949 = vrot.slane %v947, 4
    %v951 = vmax.f32 %v838, %v949
    %952 = vrot.lane.b32.xlu0 %v949, 64
    %v953 = vpop.permute.xlu0 %952
    %v954 = vsel %vm82, %v953, 0
    %956 = vmatprep.subr.mxu0 %v167
    %957 = vmatpush1.msra.mxu0 %v166
    %958 = vmatprep.subr.mxu0 %v169
    %959 = vmatpush1.msra.mxu0 %v168
    %960 = vmatprep.subr.mxu0 %v171
    %961 = vmatpush1.msra.mxu0 %v170
    %962 = vmatprep.subr.mxu0 %v173
    %963 = vmatpush1.msra.mxu0 %v172
    %964 = vmatprep.subr.mxu0 %v175
    %965 = vmatpush1.msra.mxu0 %v174
    %966 = vmatprep.subr.mxu0 %v177
    %967 = vmatpush1.msra.mxu0 %v176
    %968 = vmatprep.subr.mxu0 %v179
    %969 = vmatpush1.msra.mxu0 %v178
    %970 = vmatprep.subr.mxu0 %v181
    %971 = vmatpush1.msra.mxu0 %v180
    %972 = vmatprep.subr.mxu0 0.0
    %973 = vmatpush1.msra.mxu0 0.0
    %974 = vmatprep.subr.mxu0 0.0
    %975 = vmatpush1.msra.mxu0 0.0
    %976 = vmatprep.subr.mxu0 0.0
    %977 = vmatpush1.msra.mxu0 0.0
    %978 = vmatprep.subr.mxu0 0.0
    %979 = vmatpush1.msra.mxu0 0.0
    %980 = vmatprep.subr.mxu0 0.0
    %981 = vmatpush1.msra.mxu0 0.0
    %982 = vmatprep.subr.mxu0 0.0
    %983 = vmatpush1.msra.mxu0 0.0
    %984 = vmatprep.subr.mxu0 0.0
    %985 = vmatpush1.msra.mxu0 0.0
    %986 = vmatprep.subr.mxu0 0.0
    %987 = vmatpush1.msra.mxu0 0.0
    %988 = vmatprep.subr.mxu0 0.0
    %989 = vmatpush1.msra.mxu0 0.0
    %990 = vmatprep.subr.mxu0 0.0
    %991 = vmatpush1.msra.mxu0 0.0
    %992 = vmatprep.subr.mxu0 0.0
    %993 = vmatpush1.msra.mxu0 0.0
    %994 = vmatprep.subr.mxu0 0.0
    %995 = vmatpush1.msra.mxu0 0.0
    %996 = vmatprep.subr.mxu0 0.0
    %997 = vmatpush1.msra.mxu0 0.0
    %998 = vmatprep.subr.mxu0 0.0
    %999 = vmatpush1.msra.mxu0 0.0
    %1000 = vmatprep.subr.mxu0 0.0
    %1001 = vmatpush1.msra.mxu0 0.0
    %1002 = vmatprep.subr.mxu0 0.0
    %1003 = vmatpush1.msra.mxu0 0.0
    %1004 = vmatprep.subr.mxu0 0.0
    %1005 = vmatpush1.msra.mxu0 0.0
    %1006 = vmatprep.subr.mxu0 0.0
    %1007 = vmatpush1.msra.mxu0 0.0
    %1008 = vmatprep.subr.mxu0 0.0
    %1009 = vmatpush1.msra.mxu0 0.0
    %1010 = vmatprep.subr.mxu0 0.0
    %1011 = vmatpush1.msra.mxu0 0.0
    %1012 = vmatprep.subr.mxu0 0.0
    %1013 = vmatpush1.msra.mxu0 0.0
    %1014 = vmatprep.subr.mxu0 0.0
    %1015 = vmatpush1.msra.mxu0 0.0
    %1016 = vmatprep.subr.mxu0 0.0
    %1017 = vmatpush1.msra.mxu0 0.0
    %1018 = vmatprep.subr.mxu0 0.0
    %1019 = vmatpush1.msra.mxu0 0.0
    %1020 = vmatprep.mubr.f32.mxu0 0.0
    %1021 = vmatmul.mubr.f32.gmra.mrb[0].mxu0 %v954
    %v1022 = vpop.f32.mrb[0].mxu0
    %v1023 = vadd.f32 0.0, %v1022
    %v1024 = vpop.f32.mrb[0].mxu0
    %v1025 = vadd.f32 0.0, %v1024
    %1026 = vdwg.mxu0
    %v1029 = vrot.slane %v1023, 2
    %v1030 = vrot.slane %v1025, 2
    %v1033 = vadd.f32 %v162, %v1029
    %v1034 = vadd.f32 %v164, %v1030
    %v1035 = vxor.u32 %v1033, 2147483648
    %v1036 = vxor.u32 %v1034, 2147483648
    %v1037 = vmul.f32 %v1035, 1.442695
    %v1038 = vpow.pop %v1037
    %v1039 = vmul.f32 %v1036, 1.442695
    %v1040 = vpow.pop %v1039
    %v1041 = vadd.f32 %v1038, 1.0
    %v1042 = vadd.f32 %v1040, 1.0
    %v1043 = vrcp.pop %v1041
    %v1044 = vmul.f32 1.0, %v1043
    %v1045 = vrcp.pop %v1042
    %v1046 = vmul.f32 1.0, %v1045
    %v1047 = vmul.f32 %v1046, 2.0
    %v1048 = vsub.f32 %v1047, 1.0
    %v1050 = vrot.slane %v945, 6
    %v1052 = vmul.f32 %v1044, %v1050
    %v1053 = vmul.f32 %v1044, %v1048
    %1055 = vrot.lane.b32.xlu0 %v1053, 64
    %v1056 = vpop.permute.xlu0 %1055
    %v1058 = vadd.f32 %v1052, %v1056
    %v1059 = vtanh.pop %v1058
    %v1060 = vmul.f32 %v1046, %v1059
    %v1062 = vrot.slane %v1060, 6
    %v1064 = vmax.f32 %v951, %v1062
    %v1065 = vld [vmem:[%s4] sm:$0xff]
    %v1066 = vld [vmem:[%s4 + $0x8] sm:$0xff]
    %v1067 = vld [vmem:[%s4 + $0x10] sm:$0xff]
    %v1068 = vld [vmem:[%s4 + $0x18] sm:$0xff]
    %v1069 = vld [vmem:[%s4 + $0x20] sm:$0xff]
    %v1070 = vld [vmem:[%s4 + $0x28] sm:$0xff]
    %v1071 = vld [vmem:[%s4 + $0x30] sm:$0xff]
    %v1072 = vld [vmem:[%s4 + $0x38] sm:$0xff]
    %v1073 = vld [vmem:[%s5] sm:$0x1]
    %v1075 = vlaneseq
    %v1076 = vshrl.u32 %v1075, 7
    %v1077 = vsub.s32 0, %v1076
    %v1078 = vrot.slane %v1073, %v1077
    %1081 = vrot.lane.b32.xlu0 %v1064, 64
    %v1082 = vpop.permute.xlu0 %1081
    %v1083 = vsel %vm82, %v1082, 0
    %1085 = vmatprep.subr.mxu0 0.0
    %1086 = vmatpush1.msra.mxu0 %v1065
    %1087 = vmatprep.subr.mxu0 0.0
    %1088 = vmatpush1.msra.mxu0 %v1066
    %1089 = vmatprep.subr.mxu0 0.0
    %1090 = vmatpush1.msra.mxu0 %v1067
    %1091 = vmatprep.subr.mxu0 0.0
    %1092 = vmatpush1.msra.mxu0 %v1068
    %1093 = vmatprep.subr.mxu0 0.0
    %1094 = vmatpush1.msra.mxu0 %v1069
    %1095 = vmatprep.subr.mxu0 0.0
    %1096 = vmatpush1.msra.mxu0 %v1070
    %1097 = vmatprep.subr.mxu0 0.0
    %1098 = vmatpush1.msra.mxu0 %v1071
    %1099 = vmatprep.subr.mxu0 0.0
    %1100 = vmatpush1.msra.mxu0 %v1072
    %1101 = vmatprep.subr.mxu0 0.0
    %1102 = vmatpush1.msra.mxu0 0.0
    %1103 = vmatprep.subr.mxu0 0.0
    %1104 = vmatpush1.msra.mxu0 0.0
    %1105 = vmatprep.subr.mxu0 0.0
    %1106 = vmatpush1.msra.mxu0 0.0
    %1107 = vmatprep.subr.mxu0 0.0
    %1108 = vmatpush1.msra.mxu0 0.0
    %1109 = vmatprep.subr.mxu0 0.0
    %1110 = vmatpush1.msra.mxu0 0.0
    %1111 = vmatprep.subr.mxu0 0.0
    %1112 = vmatpush1.msra.mxu0 0.0
    %1113 = vmatprep.subr.mxu0 0.0
    %1114 = vmatpush1.msra.mxu0 0.0
    %1115 = vmatprep.subr.mxu0 0.0
    %1116 = vmatpush1.msra.mxu0 0.0
    %1117 = vmatprep.subr.mxu0 0.0
    %1118 = vmatpush1.msra.mxu0 0.0
    %1119 = vmatprep.subr.mxu0 0.0
    %1120 = vmatpush1.msra.mxu0 0.0
    %1121 = vmatprep.subr.mxu0 0.0
    %1122 = vmatpush1.msra.mxu0 0.0
    %1123 = vmatprep.subr.mxu0 0.0
    %1124 = vmatpush1.msra.mxu0 0.0
    %1125 = vmatprep.subr.mxu0 0.0
    %1126 = vmatpush1.msra.mxu0 0.0
    %1127 = vmatprep.subr.mxu0 0.0
    %1128 = vmatpush1.msra.mxu0 0.0
    %1129 = vmatprep.subr.mxu0 0.0
    %1130 = vmatpush1.msra.mxu0 0.0
    %1131 = vmatprep.subr.mxu0 0.0
    %1132 = vmatpush1.msra.mxu0 0.0
    %1133 = vmatprep.subr.mxu0 0.0
    %1134 = vmatpush1.msra.mxu0 0.0
    %1135 = vmatprep.subr.mxu0 0.0
    %1136 = vmatpush1.msra.mxu0 0.0
    %1137 = vmatprep.subr.mxu0 0.0
    %1138 = vmatpush1.msra.mxu0 0.0
    %1139 = vmatprep.subr.mxu0 0.0
    %1140 = vmatpush1.msra.mxu0 0.0
    %1141 = vmatprep.subr.mxu0 0.0
    %1142 = vmatpush1.msra.mxu0 0.0
    %1143 = vmatprep.subr.mxu0 0.0
    %1144 = vmatpush1.msra.mxu0 0.0
    %1145 = vmatprep.subr.mxu0 0.0
    %1146 = vmatpush1.msra.mxu0 0.0
    %1147 = vmatprep.subr.mxu0 0.0
    %1148 = vmatpush1.msra.mxu0 0.0
    %1149 = vmatprep.mubr.f32.mxu0 0.0
    %1150 = vmatmul.mubr.f32.gmra.mrb[0].mxu0 %v1083
    %v1151 = vpop.f32.mrb[0].mxu0
    %v1152 = vadd.f32 %v1078, %v1151
    %v1153 = vpop.f32.mrb[0].mxu0
    %1154 = vdwg.mxu0
    %vm1155 = vcmask 9216
    %1156 = vst.msk [vmem:[#allocation7] sm:$0x3] %vm1155, %v1152
    // Predicated region
    $region34: #{tpu_custom_call.1} parent=1 // pred_check
      _
    $region35: #{tpu_custom_call.1} parent=1 // pred_check_branch
      %1158 = sbr.rel (0) target = $region37
    $region36: #{tpu_custom_call.1} parent=1 // pred_region
      %s1160 = ssub.s32 32, 32
      %1161 = vsyncadd [#allocation4], %s1160
      %s1163 = sshll.u32 [#allocation7], 4
      %s1164 = int_to_ptr.vmem [resolvable:$true] %s1163
      %1166 = dma.vmem_to_hbm [thread:$0]  %s1164, 32, %s6, [#allocation4]
    $region37: #{tpu_custom_call.1} parent=1 // pred_fallthru
      _
    // Predicated region
    $region38: #{tpu_custom_call.1} parent=1 // pred_check
      _
    $region39: #{tpu_custom_call.1} parent=1 // pred_check_branch
      %1168 = sbr.rel (0) target = $region41
    $region40: #{tpu_custom_call.1} parent=1 // pred_region
      %1169 = dma.done [#allocation4], 32
    $region41: #{tpu_custom_call.1} parent=1 // pred_fallthru
      _
    %1170 = vsyncpa [#allocation3], 1
    %1171 = vsyncpa [#allocation6], 1
    %1172 = vsyncpa [#allocation4], 1

</llo_original>
